<compile_context>
chip_gen: v7x
topology: tpu7x:2x2x1
jax: 0.10.0
libtpu: 0.0.40
codegen_flags: <defaults>
</compile_context>

<pallas_src>
import jax
import jax.numpy as jnp
from jax import lax
from jax.experimental import pallas as pl
from jax.experimental.pallas import tpu as pltpu

BN_EPS = 1e-5
LANE = 128


def _round_up(x, m):
    return (x + m - 1) // m * m


def _vmem_capacity_bytes():
    try:
        info = pltpu.get_tpu_info()
        cap = getattr(info, "vmem_capacity_bytes", None)
        if cap:
            return int(cap)
    except Exception:
        pass
    return 64 << 20                       # conservative (v7x per-TensorCore)


def _pick_tile_h(Ho, Wo, row_target):
    """Largest divisor TH of Ho with TH*Wo <= row_target and a legal block
    (TH*Wo % 8 == 0, or the full image TH == Ho)."""
    best = None
    for d in range(1, Ho + 1):
        if Ho % d:
            continue
        rows = d * Wo
        if rows <= row_target and (d == Ho or rows % 8 == 0):
            best = d
    return best if best is not None else Ho


def _make_conv_stats_kernel(stride, tile_h, Wo):
    rows = tile_h * Wo

    def kernel(*refs):
        w_ref = refs[0]                        # [3, 3*Cin, TCO]
        v_refs = refs[1:1 + stride]            # each [1, (Ho+e)*Wo, 3*Cin]
        y_ref, tmean_ref, tm2_ref = refs[1 + stride:]

        hb = pl.program_id(1)

        # 3 accumulated MXU matmuls (one per kh tap), K = 3*Cin, f32 accum in
        # a local value (no scratch, no redundant acc->y copy).
        acc = None
        for kh in range(3):
            bh, oh = kh % stride, kh // stride
            start = (hb * tile_h + oh) * Wo    # flattened output-row offset
            if Wo % 8 == 0:
                start = pl.multiple_of(start, 8)
            x_tile = v_refs[bh][0, pl.ds(start, rows), :]      # [rows, 3*Cin]
            part = jnp.dot(x_tile, w_ref[kh],
                           preferred_element_type=jnp.float32)
            acc = part if acc is None else acc + part

        # Store conv output in bf16 (inter-pass HBM traffic halved); the BN
        # partial statistics are taken from the f32 accumulator.
        y_ref[0] = acc.astype(y_ref.dtype)
        tmean = jnp.mean(acc, axis=0, keepdims=True)           # [1, TCO]
        tmean_ref[0, 0] = tmean
        tm2_ref[0, 0] = jnp.sum((acc - tmean) ** 2, axis=0, keepdims=True)

    return kernel


def conv_bn_relu(x_nchw, weight_oihw, gamma, beta, stride,
                 *, compute_dtype=jnp.bfloat16, row_target=None):
    """Forward of ConvBN. x_nchw: [N, Cin, H, W] -> [N, Cout, Ho, Wo]."""
    N, Cin, H, W = x_nchw.shape
    Cout = weight_oihw.shape[0]
    Ho = (H + 2 - 3) // stride + 1
    Wo = (W + 2 - 3) // stride + 1
    e = 2 // stride                       # output-row halo along H per image
    Coutp = _round_up(Cout, LANE)
    TCO = 256 if Coutp % 256 == 0 else LANE
    CO = Coutp // TCO
    K = 3 * Cin

    # Per-generation VMEM budget (leave headroom for compiler scratch):
    # ~51 MiB on v7x (64 MiB physical per TC), ~102 MiB on v5e/v6e (128 MiB).
    vmem_cap = _vmem_capacity_bytes()
    budget = int(vmem_cap * 0.8)
    if row_target is None:
        row_target = 1024 if vmem_cap >= (100 << 20) else 512

    TH = _pick_tile_h(Ho, Wo, row_target)
    HB = Ho // TH
    rows = TH * Wo
    view_rows = (Ho + e) * Wo

    # NCHW -> NHWC, conv zero-pad (1 each side) plus enough extra bottom rows
    # that every H-phase view below has a uniform Ho + e rows.
    x_nhwc = jnp.transpose(x_nchw, (0, 2, 3, 1))
    pad_h_extra = max(0, stride * (Ho + e) - (H + 2))
    xp = jnp.pad(x_nhwc, ((0, 0), (1, 1 + pad_h_extra), (1, 1), (0, 0)))

    # Tap views with kw folded into the channel (contraction) dimension:
    #   view[bh][n, r*Wo + wo, kw*Cin + c] = xp[n, bh + stride*r, kw + stride*wo, c]
    # Tap (kh, kw) of output row ho is a contiguous row slice (offset oh=kh//stride)
    # of view[bh=kh%stride].  Only `stride` views are materialized; total bytes
    # equal the previous 3*stride narrow views.
    views = []
    for bh in range(stride):
        taps = [xp[:, bh: bh + stride * (Ho + e - 1) + 1: stride,
                   kw: kw + stride * (Wo - 1) + 1: stride, :]
                for kw in range(3)]
        v = jnp.concatenate(taps, axis=-1)            # [N, Ho+e, Wo, 3*Cin]
        views.append(v.reshape(N, view_rows, K).astype(compute_dtype))

    # Weights: OIHW -> [3 (kh), 3*Cin (kw,ci), Coutp], zero-padded out channels.
    w = jnp.transpose(weight_oihw, (2, 3, 1, 0))      # [3, 3, Cin, Cout]
    w = jnp.pad(w, ((0, 0), (0, 0), (0, 0), (0, Coutp - Cout)))
    w = w.reshape(3, K, Coutp).astype(compute_dtype)

    cbytes = jnp.dtype(compute_dtype).itemsize
    vmem_est = (2 * stride * view_rows * K * cbytes       # double-buffered views
                + 2 * 3 * K * TCO * cbytes                # weight block
                + 2 * rows * TCO * cbytes                 # bf16 y block (x2)
                + rows * TCO * 4                          # f32 local accumulator
                + 4 * 2 * TCO * 4                         # stat blocks
                + (2 << 20))
    vmem_limit = int(min(max(vmem_est, 32 << 20), budget))
    # NOTE: for very large images whose whole-image tap views exceed `budget`,
    # row-tiled halo views (element-offset BlockSpecs) would be required; not
    # needed for SSD-scale shapes.

    grid = (N, HB, CO)
    v_spec = pl.BlockSpec((1, view_rows, K), lambda n, hb, co: (n, 0, 0))
    w_spec = pl.BlockSpec((3, K, TCO), lambda n, hb, co: (0, 0, co))
    y_spec = pl.BlockSpec((1, rows, TCO), lambda n, hb, co: (n, hb, co))
    stat_spec = pl.BlockSpec((1, 1, 1, TCO), lambda n, hb, co: (n, hb, 0, co))

    # Pass 1: conv (3 accumulated MXU matmuls, K=3*Cin) + per-tile BN partials.
    y, tmean, tm2 = pl.pallas_call(
        _make_conv_stats_kernel(stride, TH, Wo),
        grid=grid,
        in_specs=[w_spec] + [v_spec] * stride,
        out_specs=(y_spec, stat_spec, stat_spec),
        out_shape=(jax.ShapeDtypeStruct((N, Ho * Wo, Coutp), compute_dtype),
                   jax.ShapeDtypeStruct((N, HB, 1, Coutp), jnp.float32),
                   jax.ShapeDtypeStruct((N, HB, 1, Coutp), jnp.float32)),
        compiler_params=pltpu.CompilerParams(
            dimension_semantics=("parallel", "parallel", "parallel"),
            vmem_limit_bytes=vmem_limit),
    )(w, *views)

    # Combine per-tile (mean, M2) into batch statistics with Chan's formula
    # (every tile has exactly `rows` elements per channel because TH | Ho, so
    # the combine is exact and avoids E[y^2]-E[y]^2 cancellation).
    tmeans = tmean.reshape(N * HB, Coutp)
    tm2s = tm2.reshape(N * HB, Coutp)
    count = N * Ho * Wo
    mean = jnp.mean(tmeans, axis=0)
    m2 = jnp.sum(tm2s, axis=0) + rows * jnp.sum((tmeans - mean) ** 2, axis=0)
    var = m2 / count                      # biased variance (BN normalization)

    gamma_p = jnp.pad(gamma.astype(jnp.float32), (0, Coutp - Cout))
    beta_p = jnp.pad(beta.astype(jnp.float32), (0, Coutp - Cout))
    scale = gamma_p * lax.rsqrt(var + BN_EPS)
    shift = beta_p - mean * scale
    # TODO(synk): training-mode BatchNorm2d also updates running_mean /
    # running_var buffers (momentum); that side effect is not part of the
    # returned forward value and is not implemented here.

    # Fused epilogue (one XLA pass): affine + ReLU + channel slice + NCHW
    # transpose, reading the bf16 y exactly once.
    yf = y.astype(jnp.float32) * scale.reshape(1, 1, Coutp) + shift.reshape(1, 1, Coutp)
    out = jnp.maximum(yf, 0.0)[:, :, :Cout].reshape(N, Ho, Wo, Cout)
    return jnp.transpose(out, (0, 3, 1, 2)).astype(x_nchw.dtype)


def _reference(x_nchw, weight_oihw, gamma, beta, stride,
               compute_dtype=jnp.bfloat16):
    """Conv2d(3, stride, pad=1, no bias) + training-mode BN + ReLU, with conv
    inputs cast to the same MXU dtype as the kernel (f32 accumulation)."""
    y = lax.conv_general_dilated(
        x_nchw.astype(compute_dtype), weight_oihw.astype(compute_dtype),
        window_strides=(stride, stride), padding=((1, 1), (1, 1)),
        dimension_numbers=("NCHW", "OIHW", "NCHW"),
        preferred_element_type=jnp.float32)
    mean = jnp.mean(y, axis=(0, 2, 3), keepdims=True)
    var = jnp.mean((y - mean) ** 2, axis=(0, 2, 3), keepdims=True)
    y = (y - mean) * lax.rsqrt(var + BN_EPS)
    y = y * gamma.reshape(1, -1, 1, 1) + beta.reshape(1, -1, 1, 1)
    return jnp.maximum(y, 0.0)


if __name__ == "__main__":
    key = jax.random.PRNGKey(0)
    k_x, k_w, k_g, k_b = jax.random.split(key, 4)

    N, Cin, H, W = 2, 4, 16, 16
    Cout = 8

    x = jax.random.normal(k_x, (N, Cin, H, W), dtype=jnp.float32)
    weight = jax.random.normal(k_w, (Cout, Cin, 3, 3), dtype=jnp.float32) * 0.1
    gamma = 1.0 + 0.1 * jax.random.normal(k_g, (Cout,), dtype=jnp.float32)
    beta = 0.1 * jax.random.normal(k_b, (Cout,), dtype=jnp.float32)

    # stride 2 (ConvBN downsample) and stride 1 with a small row_target so the
    # M = Ho*Wo dimension is genuinely tiled (HB > 1) and the cross-tile
    # batch-statistics combine is exercised.
    for stride, row_target in ((2, 512), (1, 64)):
        out = conv_bn_relu(x, weight, gamma, beta, stride,
                           row_target=row_target)
        out = jax.block_until_ready(out)
        ref = _reference(x, weight, gamma, beta, stride)
        Ho = (H + 2 - 3) // stride + 1
        Wo = (W + 2 - 3) // stride + 1
        assert out.shape == (N, Cout, Ho, Wo), out.shape
        err = float(jnp.max(jnp.abs(out - ref)))
        # Tolerance accounts for the bf16 inter-pass y (statistics themselves
        # are computed in f32 before the downcast); normalized outputs are O(1)
        # so one bf16 ulp on y maps to ~1e-2 here.
        assert err < 3e-2, err

    print("KERNEL_OK")
</pallas_src>

<mosaic_0001>
module attributes {stable_mosaic.version = 11 : i64} {
  func.func @kernel(%arg0: i32, %arg1: i32, %arg2: i32, %arg3: memref<3x12x128xbf16, #tpu.memory_space<vmem>>, %arg4: memref<1x72x12xbf16, #tpu.memory_space<vmem>>, %arg5: memref<1x72x12xbf16, #tpu.memory_space<vmem>>, %arg6: memref<1x64x128xbf16, #tpu.memory_space<vmem>>, %arg7: memref<1x1x1x128xf32, #tpu.memory_space<vmem>>, %arg8: memref<1x1x1x128xf32, #tpu.memory_space<vmem>>) attributes {dimension_semantics = [#tpu.dimension_semantics<parallel>, #tpu.dimension_semantics<parallel>, #tpu.dimension_semantics<parallel>], iteration_bounds = array<i64: 2, 1, 1>, scalar_prefetch = 0 : i64, scratch_operands = 0 : i64, tpu.core_type = #tpu.core_type<tc>, window_params = [{transform_indices = @transform_0, window_bounds = array<i64: 3, 12, 128>}, {transform_indices = @transform_1, window_bounds = array<i64: 1, 72, 12>}, {transform_indices = @transform_2, window_bounds = array<i64: 1, 72, 12>}, {transform_indices = @transform_3, window_bounds = array<i64: 1, 64, 128>}, {transform_indices = @transform_4, window_bounds = array<i64: 1, 1, 1, 128>}, {transform_indices = @transform_5, window_bounds = array<i64: 1, 1, 1, 128>}]} {
    %c8_i32 = arith.constant 8 : i32
    %0 = arith.muli %arg1, %c8_i32 : i32
    %c0_i32 = arith.constant 0 : i32
    %1 = arith.addi %0, %c0_i32 : i32
    %c8_i32_0 = arith.constant 8 : i32
    %2 = arith.muli %1, %c8_i32_0 : i32
    %3 = tpu.assume_multiple %2, 8 : i32
    %c0 = arith.constant 0 : index
    %4 = arith.index_cast %3 : i32 to index
    %c0_1 = arith.constant 0 : index
    %5 = vector.load %arg4[%c0, %4, %c0_1] : memref<1x72x12xbf16, #tpu.memory_space<vmem>>, vector<1x64x12xbf16>
    %6 = vector.shape_cast %5 : vector<1x64x12xbf16> to vector<64x12xbf16>
    %c0_2 = arith.constant 0 : index
    %c0_3 = arith.constant 0 : index
    %c0_4 = arith.constant 0 : index
    %7 = vector.load %arg3[%c0_2, %c0_3, %c0_4] : memref<3x12x128xbf16, #tpu.memory_space<vmem>>, vector<1x12x128xbf16>
    %8 = vector.shape_cast %7 : vector<1x12x128xbf16> to vector<12x128xbf16>
    %cst = arith.constant dense<0.000000e+00> : vector<64x128xf32>
    %9 = tpu.matmul %6, %8, %cst {dimension_numbers = #tpu.dot_dimension_numbers<[1], [0], [0], [1], [0, 0, 1, 1], [], []>} : vector<64x12xbf16>, vector<12x128xbf16>, vector<64x128xf32> -> vector<64x128xf32>
    %c8_i32_5 = arith.constant 8 : i32
    %10 = arith.muli %arg1, %c8_i32_5 : i32
    %c0_i32_6 = arith.constant 0 : i32
    %11 = arith.addi %10, %c0_i32_6 : i32
    %c8_i32_7 = arith.constant 8 : i32
    %12 = arith.muli %11, %c8_i32_7 : i32
    %13 = tpu.assume_multiple %12, 8 : i32
    %c0_8 = arith.constant 0 : index
    %14 = arith.index_cast %13 : i32 to index
    %c0_9 = arith.constant 0 : index
    %15 = vector.load %arg5[%c0_8, %14, %c0_9] : memref<1x72x12xbf16, #tpu.memory_space<vmem>>, vector<1x64x12xbf16>
    %16 = vector.shape_cast %15 : vector<1x64x12xbf16> to vector<64x12xbf16>
    %c1 = arith.constant 1 : index
    %c0_10 = arith.constant 0 : index
    %c0_11 = arith.constant 0 : index
    %17 = vector.load %arg3[%c1, %c0_10, %c0_11] : memref<3x12x128xbf16, #tpu.memory_space<vmem>>, vector<1x12x128xbf16>
    %18 = vector.shape_cast %17 : vector<1x12x128xbf16> to vector<12x128xbf16>
    %cst_12 = arith.constant dense<0.000000e+00> : vector<64x128xf32>
    %19 = tpu.matmul %16, %18, %cst_12 {dimension_numbers = #tpu.dot_dimension_numbers<[1], [0], [0], [1], [0, 0, 1, 1], [], []>} : vector<64x12xbf16>, vector<12x128xbf16>, vector<64x128xf32> -> vector<64x128xf32>
    %20 = arith.addf %9, %19 : vector<64x128xf32>
    %c8_i32_13 = arith.constant 8 : i32
    %21 = arith.muli %arg1, %c8_i32_13 : i32
    %c1_i32 = arith.constant 1 : i32
    %22 = arith.addi %21, %c1_i32 : i32
    %c8_i32_14 = arith.constant 8 : i32
    %23 = arith.muli %22, %c8_i32_14 : i32
    %24 = tpu.assume_multiple %23, 8 : i32
    %c0_15 = arith.constant 0 : index
    %25 = arith.index_cast %24 : i32 to index
    %c0_16 = arith.constant 0 : index
    %26 = vector.load %arg4[%c0_15, %25, %c0_16] : memref<1x72x12xbf16, #tpu.memory_space<vmem>>, vector<1x64x12xbf16>
    %27 = vector.shape_cast %26 : vector<1x64x12xbf16> to vector<64x12xbf16>
    %c2 = arith.constant 2 : index
    %c0_17 = arith.constant 0 : index
    %c0_18 = arith.constant 0 : index
    %28 = vector.load %arg3[%c2, %c0_17, %c0_18] : memref<3x12x128xbf16, #tpu.memory_space<vmem>>, vector<1x12x128xbf16>
    %29 = vector.shape_cast %28 : vector<1x12x128xbf16> to vector<12x128xbf16>
    %cst_19 = arith.constant dense<0.000000e+00> : vector<64x128xf32>
    %30 = tpu.matmul %27, %29, %cst_19 {dimension_numbers = #tpu.dot_dimension_numbers<[1], [0], [0], [1], [0, 0, 1, 1], [], []>} : vector<64x12xbf16>, vector<12x128xbf16>, vector<64x128xf32> -> vector<64x128xf32>
    %31 = arith.addf %20, %30 : vector<64x128xf32>
    %32 = arith.truncf %31 : vector<64x128xf32> to vector<64x128xbf16>
    %c0_20 = arith.constant 0 : index
    %c0_21 = arith.constant 0 : index
    %c0_22 = arith.constant 0 : index
    %33 = vector.load %arg6[%c0_20, %c0_21, %c0_22] : memref<1x64x128xbf16, #tpu.memory_space<vmem>>, vector<1x64x128xbf16>
    %34 = vector.shape_cast %33 : vector<1x64x128xbf16> to vector<64x128xbf16>
    %35 = vector.shape_cast %32 : vector<64x128xbf16> to vector<1x64x128xbf16>
    tpu.vector_store %arg6[%c0_20, %c0_21, %c0_22], %35 {strides = array<i32>} : memref<1x64x128xbf16, #tpu.memory_space<vmem>>, vector<1x64x128xbf16>,
    %cst_23 = arith.constant dense<0.000000e+00> : vector<128xf32>
    %36 = vector.multi_reduction <add>, %31, %cst_23 [0] : vector<64x128xf32> to vector<128xf32>
    %37 = vector.shape_cast %36 : vector<128xf32> to vector<1x128xf32>
    %cst_24 = arith.constant 6.400000e+01 : f32
    %38 = vector.broadcast %cst_24 : f32 to vector<1x128xf32>
    %39 = arith.divf %37, %38 : vector<1x128xf32>
    %c0_25 = arith.constant 0 : index
    %c0_26 = arith.constant 0 : index
    %c0_27 = arith.constant 0 : index
    %c0_28 = arith.constant 0 : index
    %40 = vector.load %arg7[%c0_25, %c0_26, %c0_27, %c0_28] : memref<1x1x1x128xf32, #tpu.memory_space<vmem>>, vector<1x1x1x128xf32>
    %41 = vector.shape_cast %40 : vector<1x1x1x128xf32> to vector<1x128xf32>
    %42 = vector.shape_cast %39 : vector<1x128xf32> to vector<1x1x1x128xf32>
    tpu.vector_store %arg7[%c0_25, %c0_26, %c0_27, %c0_28], %42 {strides = array<i32>} : memref<1x1x1x128xf32, #tpu.memory_space<vmem>>, vector<1x1x1x128xf32>,
    %43 = vector.broadcast %39 : vector<1x128xf32> to vector<64x128xf32>
    %44 = arith.subf %31, %43 : vector<64x128xf32>
    %45 = arith.mulf %44, %44 : vector<64x128xf32>
    %cst_29 = arith.constant dense<0.000000e+00> : vector<128xf32>
    %46 = vector.multi_reduction <add>, %45, %cst_29 [0] : vector<64x128xf32> to vector<128xf32>
    %47 = vector.shape_cast %46 : vector<128xf32> to vector<1x128xf32>
    %c0_30 = arith.constant 0 : index
    %c0_31 = arith.constant 0 : index
    %c0_32 = arith.constant 0 : index
    %c0_33 = arith.constant 0 : index
    %48 = vector.load %arg8[%c0_30, %c0_31, %c0_32, %c0_33] : memref<1x1x1x128xf32, #tpu.memory_space<vmem>>, vector<1x1x1x128xf32>
    %49 = vector.shape_cast %48 : vector<1x1x1x128xf32> to vector<1x128xf32>
    %50 = vector.shape_cast %47 : vector<1x128xf32> to vector<1x1x1x128xf32>
    tpu.vector_store %arg8[%c0_30, %c0_31, %c0_32, %c0_33], %50 {strides = array<i32>} : memref<1x1x1x128xf32, #tpu.memory_space<vmem>>, vector<1x1x1x128xf32>,
    return
  }
  func.func @transform_0(%arg0: i32, %arg1: i32, %arg2: i32) -> (i32, i32, i32) {
    %c0_i32 = arith.constant 0 : i32
    %c0_i32_0 = arith.constant 0 : i32
    %c0_i32_1 = arith.constant 0 : i32
    return %c0_i32, %c0_i32_0, %arg2 : i32, i32, i32
  }
  func.func @transform_1(%arg0: i32, %arg1: i32, %arg2: i32) -> (i32, i32, i32) {
    %c0_i32 = arith.constant 0 : i32
    %c0_i32_0 = arith.constant 0 : i32
    %c0_i32_1 = arith.constant 0 : i32
    return %arg0, %c0_i32, %c0_i32_0 : i32, i32, i32
  }
  func.func @transform_2(%arg0: i32, %arg1: i32, %arg2: i32) -> (i32, i32, i32) {
    %c0_i32 = arith.constant 0 : i32
    %c0_i32_0 = arith.constant 0 : i32
    %c0_i32_1 = arith.constant 0 : i32
    return %arg0, %c0_i32, %c0_i32_0 : i32, i32, i32
  }
  func.func @transform_3(%arg0: i32, %arg1: i32, %arg2: i32) -> (i32, i32, i32) {
    %c0_i32 = arith.constant 0 : i32
    return %arg0, %arg1, %arg2 : i32, i32, i32
  }
  func.func @transform_4(%arg0: i32, %arg1: i32, %arg2: i32) -> (i32, i32, i32, i32) {
    %c0_i32 = arith.constant 0 : i32
    %c0_i32_0 = arith.constant 0 : i32
    return %arg0, %arg1, %c0_i32, %arg2 : i32, i32, i32, i32
  }
  func.func @transform_5(%arg0: i32, %arg1: i32, %arg2: i32) -> (i32, i32, i32, i32) {
    %c0_i32 = arith.constant 0 : i32
    %c0_i32_0 = arith.constant 0 : i32
    return %arg0, %arg1, %c0_i32, %arg2 : i32, i32, i32, i32
  }
}

</mosaic_0001>

<llo_original>
// kernel: tpu_custom_call.1
$region0: #{tpu_custom_call.1}
  #allocation0 [shape = 'u32[]', space=smem, size = 0x4, offset = 0x4, fixed_abs, tag = 'smem constant byte address 0x4 - core index']
  #allocation1 [shape = 'u32[144,128]{1,0:T(1,128)}', space=vmem, size = 0x12000, scoped, tag = 'internal scratch']
  %s0 = inlined_call_operand.vmem [shape: bf16[3,12,128], index: 0, kind: input, shape index: {}]
  %s1 = inlined_call_operand.vmem [shape: bf16[2,72,12], index: 1, kind: input, shape index: {}]
  %s2 = inlined_call_operand.vmem [shape: bf16[2,72,12], index: 2, kind: input, shape index: {}]
  %s3 = inlined_call_operand.hbm [shape: bf16[2,64,128], index: 3, kind: output, shape index: {0}]
  %s4 = inlined_call_operand.hbm [shape: f32[2,1,1,128], index: 4, kind: output, shape index: {1}]
  %s5 = inlined_call_operand.hbm [shape: f32[2,1,1,128], index: 5, kind: output, shape index: {2}]
  %6 = xla_tuple %s3, %s4, %s5
  %s7 = sld [smem:[#allocation0]]
  $region61: #{tpu_custom_call.1} parent=0
    _
  %s9 = ssub.s32 1, %s7
  %s10 = scalar_select 0, %s9, %s7
  $region1: #{tpu_custom_call.1} parent=0
    #allocation2 [shape = 'u8[32768]{0}', space=vmem, size = 0x8000, scoped, tag = 'output window, operand 0']
    #allocation3 [shape = 's32[2]{0}', space=sflag, size = 0x8, scoped, tag = 'scoped memory for tpu_custom_call.1']
    #allocation4 [shape = 'u8[1024]{0}', space=vmem, size = 0x400, scoped, tag = 'output window, operand 1']
    #allocation5 [shape = 's32[2]{0}', space=sflag, size = 0x8, scoped, tag = 'scoped memory for tpu_custom_call.1']
    #allocation6 [shape = 'u8[1024]{0}', space=vmem, size = 0x400, scoped, tag = 'output window, operand 2']
    %11 = vsyncpa [#allocation3], 0
    %s12 = scalar_lea.sflag [#allocation3], 1
    %13 = vsyncpa %s12, 0
    %14 = vsyncpa [#allocation5], 0
    %s15 = scalar_lea.sflag [#allocation5], 1
    %16 = vsyncpa %s15, 0
    loop: start=0, step=1, limit=4
    $region2: #{tpu_custom_call.1} parent=1 // loop_pre_header
      _
    $region3: #{tpu_custom_call.1} parent=1 // loop_header
      %s18 = sphi 0, %s22
      %p19 = scmp.ge.s32.totalorder %s18, 4
      %s25 = sphi 0, %s44
      %s26 = sphi 0, %s40
      %s27 = sphi 0, %s36
      %s28 = sphi 0, %s25
      %s29 = sphi 0, %s26
      %s30 = sphi 0, %s27
      %s31 = sphi 0, %s28
      %s32 = sphi 0, %s29
      %s33 = sphi 0, %s30
      %s47 = sphi 0, %s49
      %s50 = sphi 0, %s47
      %s51 = sphi 0, %s50
      %s67 = sphi 0, %s51
      %s73 = sphi 0, %s75
      %s76 = sphi 0, %s73
      %s77 = sphi 0, %s76
      %s93 = sphi 0, %s77
      %s99 = sphi 0, %s101
      %s102 = sphi 0, %s99
      %s103 = sphi 0, %s102
      %s119 = sphi 0, %s103
      %s129 = sphi 0, %s131
      %s132 = sphi 0, %s129
      %s133 = sphi 0, %s132
      %s149 = sphi 0, %s133
      %s159 = sphi 0, %s161
      %s162 = sphi 0, %s159
      %s163 = sphi 0, %s162
      %s179 = sphi 0, %s163
      %s189 = sphi 0, %s191
      %s192 = sphi 0, %s189
      %s193 = sphi 0, %s192
      %s209 = sphi 0, %s193
    $region4: #{tpu_custom_call.1} parent=1 // loop_header_branch
      %21 = sbr.rel (%p19) target = $region8
    $region5: #{tpu_custom_call.1} parent=1 // loop_body
      %s23 = ssub.s32 %s18, 1
      %s24 = ssub.s32 %s18, 2
      %s34 = sadd.s32 1, %s27
      %p35 = scmp.ge.s32.totalorder %s34, 1
      %s36 = scalar_select %p35, 0, %s34
      %s37 = sadd.s32 1, %s26
      %s38 = scalar_select %p35, %s37, %s26
      %p39 = scmp.ge.s32.totalorder %s38, 1
      %s40 = scalar_select %p39, 0, %s38
      %s41 = sadd.s32 1, %s25
      %s42 = scalar_select %p39, %s41, %s25
      %p43 = scmp.ge.s32.totalorder %s42, 2
      %s44 = scalar_select %p43, 0, %s42
      %s45 = ssub.s32 %s27, %s36
      %p46 = scmp.eq.s32.totalorder %s45, 0
      %s48 = sadd.s32 %s47, 1
      %s49 = scalar_select %p46, %s47, %s48
      %p52 = pneg %p46
      %p53 = scmp.eq.s32.totalorder %s18, 1
      %p54 = por %p52, %p53
      %p55 = scmp.ne.s32.totalorder %s47, %s50
      %p56 = scmp.eq.s32.totalorder %s18, 0
      %p57 = por %p55, %p56
      %p58 = scmp.ne.s32.totalorder %s47, %s50
      %p59 = scmp.eq.s32.totalorder %s23, 1
      %p60 = por %p58, %p59
      %p61 = scmp.ne.s32.totalorder %s50, %s51
      %p62 = scmp.eq.s32.totalorder %s23, 0
      %p63 = por %p61, %p62
      %p64 = scmp.ne.s32.totalorder %s50, %s51
      %p65 = scmp.eq.s32.totalorder %s24, 1
      %p66 = por %p64, %p65
      %p68 = scmp.ne.s32.totalorder %s51, %s67
      %p69 = scmp.eq.s32.totalorder %s24, 0
      %p70 = por %p68, %p69
      %s71 = ssub.s32 %s25, %s44
      %p72 = scmp.eq.s32.totalorder %s71, 0
      %s74 = sadd.s32 %s73, 1
      %s75 = scalar_select %p72, %s73, %s74
      %p78 = pneg %p72
      %p79 = scmp.eq.s32.totalorder %s18, 1
      %p80 = por %p78, %p79
      %p81 = scmp.ne.s32.totalorder %s73, %s76
      %p82 = scmp.eq.s32.totalorder %s18, 0
      %p83 = por %p81, %p82
      %p84 = scmp.ne.s32.totalorder %s73, %s76
      %p85 = scmp.eq.s32.totalorder %s23, 1
      %p86 = por %p84, %p85
      %p87 = scmp.ne.s32.totalorder %s76, %s77
      %p88 = scmp.eq.s32.totalorder %s23, 0
      %p89 = por %p87, %p88
      %p90 = scmp.ne.s32.totalorder %s76, %s77
      %p91 = scmp.eq.s32.totalorder %s24, 1
      %p92 = por %p90, %p91
      %p94 = scmp.ne.s32.totalorder %s77, %s93
      %p95 = scmp.eq.s32.totalorder %s24, 0
      %p96 = por %p94, %p95
      %s97 = ssub.s32 %s25, %s44
      %p98 = scmp.eq.s32.totalorder %s97, 0
      %s100 = sadd.s32 %s99, 1
      %s101 = scalar_select %p98, %s99, %s100
      %p104 = pneg %p98
      %p105 = scmp.eq.s32.totalorder %s18, 1
      %p106 = por %p104, %p105
      %p107 = scmp.ne.s32.totalorder %s99, %s102
      %p108 = scmp.eq.s32.totalorder %s18, 0
      %p109 = por %p107, %p108
      %p110 = scmp.ne.s32.totalorder %s99, %s102
      %p111 = scmp.eq.s32.totalorder %s23, 1
      %p112 = por %p110, %p111
      %p113 = scmp.ne.s32.totalorder %s102, %s103
      %p114 = scmp.eq.s32.totalorder %s23, 0
      %p115 = por %p113, %p114
      %p116 = scmp.ne.s32.totalorder %s102, %s103
      %p117 = scmp.eq.s32.totalorder %s24, 1
      %p118 = por %p116, %p117
      %p120 = scmp.ne.s32.totalorder %s103, %s119
      %p121 = scmp.eq.s32.totalorder %s24, 0
      %p122 = por %p120, %p121
      %s123 = ssub.s32 %s25, %s44
      %s124 = ssub.s32 %s26, %s40
      %s125 = sor.u32 %s123, %s124
      %s126 = ssub.s32 %s27, %s36
      %s127 = sor.u32 %s125, %s126
      %p128 = scmp.eq.s32.totalorder %s127, 0
      %s130 = sadd.s32 %s129, 1
      %s131 = scalar_select %p128, %s129, %s130
      %p134 = pneg %p128
      %p135 = scmp.eq.s32.totalorder %s18, 1
      %p136 = por %p134, %p135
      %p137 = scmp.ne.s32.totalorder %s129, %s132
      %p138 = scmp.eq.s32.totalorder %s18, 0
      %p139 = por %p137, %p138
      %p140 = scmp.ne.s32.totalorder %s129, %s132
      %p141 = scmp.eq.s32.totalorder %s23, 1
      %p142 = por %p140, %p141
      %p143 = scmp.ne.s32.totalorder %s132, %s133
      %p144 = scmp.eq.s32.totalorder %s23, 0
      %p145 = por %p143, %p144
      %p146 = scmp.ne.s32.totalorder %s132, %s133
      %p147 = scmp.eq.s32.totalorder %s24, 1
      %p148 = por %p146, %p147
      %p150 = scmp.ne.s32.totalorder %s133, %s149
      %p151 = scmp.eq.s32.totalorder %s24, 0
      %p152 = por %p150, %p151
      %s153 = ssub.s32 %s25, %s44
      %s154 = ssub.s32 %s26, %s40
      %s155 = sor.u32 %s153, %s154
      %s156 = ssub.s32 %s27, %s36
      %s157 = sor.u32 %s155, %s156
      %p158 = scmp.eq.s32.totalorder %s157, 0
      %s160 = sadd.s32 %s159, 1
      %s161 = scalar_select %p158, %s159, %s160
      %p164 = pneg %p158
      %p165 = scmp.eq.s32.totalorder %s18, 1
      %p166 = por %p164, %p165
      %p167 = scmp.ne.s32.totalorder %s159, %s162
      %p168 = scmp.eq.s32.totalorder %s18, 0
      %p169 = por %p167, %p168
      %p170 = scmp.ne.s32.totalorder %s159, %s162
      %p171 = scmp.eq.s32.totalorder %s23, 1
      %p172 = por %p170, %p171
      %p173 = scmp.ne.s32.totalorder %s162, %s163
      %p174 = scmp.eq.s32.totalorder %s23, 0
      %p175 = por %p173, %p174
      %p176 = scmp.ne.s32.totalorder %s162, %s163
      %p177 = scmp.eq.s32.totalorder %s24, 1
      %p178 = por %p176, %p177
      %p180 = scmp.ne.s32.totalorder %s163, %s179
      %p181 = scmp.eq.s32.totalorder %s24, 0
      %p182 = por %p180, %p181
      %s183 = ssub.s32 %s25, %s44
      %s184 = ssub.s32 %s26, %s40
      %s185 = sor.u32 %s183, %s184
      %s186 = ssub.s32 %s27, %s36
      %s187 = sor.u32 %s185, %s186
      %p188 = scmp.eq.s32.totalorder %s187, 0
      %s190 = sadd.s32 %s189, 1
      %s191 = scalar_select %p188, %s189, %s190
      %p194 = pneg %p188
      %p195 = scmp.eq.s32.totalorder %s18, 1
      %p196 = por %p194, %p195
      %p197 = scmp.ne.s32.totalorder %s189, %s192
      %p198 = scmp.eq.s32.totalorder %s18, 0
      %p199 = por %p197, %p198
      %p200 = scmp.ne.s32.totalorder %s189, %s192
      %p201 = scmp.eq.s32.totalorder %s23, 1
      %p202 = por %p200, %p201
      %p203 = scmp.ne.s32.totalorder %s192, %s193
      %p204 = scmp.eq.s32.totalorder %s23, 0
      %p205 = por %p203, %p204
      %p206 = scmp.ne.s32.totalorder %s192, %s193
      %p207 = scmp.eq.s32.totalorder %s24, 1
      %p208 = por %p206, %p207
      %p210 = scmp.ne.s32.totalorder %s193, %s209
      %p211 = scmp.eq.s32.totalorder %s24, 0
      %p212 = por %p210, %p211
      %p213 = scmp.le.s32.totalorder 1, %s18
      %p214 = scmp.lt.s32.totalorder %s18, 3
      %p215 = pnand %p213, %p214
      %p216 = pneg %p215
      // Predicated region
      $region9: #{tpu_custom_call.1} parent=5 // pred_check
        _
      $region10: #{tpu_custom_call.1} parent=5 // pred_check_branch
        %218 = sbr.rel (%p215) target = $region12
      $region11: #{tpu_custom_call.1} parent=5 // pred_region
        %s219 = ssub.s32 %s18, 1
        // Predicated region
        $region13: #{tpu_custom_call.1} parent=11 // pred_check
          %p220 = pneg %p63
        $region14: #{tpu_custom_call.1} parent=11 // pred_check_branch
          %222 = sbr.rel (%p220) target = $region16
        $region15: #{tpu_custom_call.1} parent=11 // pred_region
          %p223 = scmp.lt.s32.totalorder %s30, 0
          %s224 = scalar_select %p223, %s30, 0
          %s225 = smul.addr %s224, 4
          %s226 = scalar_lea.vmem %s0, %s225
        $region16: #{tpu_custom_call.1} parent=11 // pred_fallthru
          _
      $region12: #{tpu_custom_call.1} parent=5 // pred_fallthru
        _
      %p227 = scmp.lt.s32.totalorder %s18, 2
      // Predicated region
      $region17: #{tpu_custom_call.1} parent=5 // pred_check
        %p228 = pneg %p227
      $region18: #{tpu_custom_call.1} parent=5 // pred_check_branch
        %230 = sbr.rel (%p228) target = $region20
      $region19: #{tpu_custom_call.1} parent=5 // pred_region
        // Predicated region
        $region21: #{tpu_custom_call.1} parent=19 // pred_check
          %p231 = pneg %p83
        $region22: #{tpu_custom_call.1} parent=19 // pred_check_branch
          %233 = sbr.rel (%p231) target = $region24
        $region23: #{tpu_custom_call.1} parent=19 // pred_region
          %p234 = scmp.lt.s32.totalorder %s25, 1
          %s235 = scalar_select %p234, %s25, 1
          %s236 = smul.addr %s235, 9
          %s237 = smul.addr %s236, 4
          %s238 = scalar_lea.vmem %s1, %s237
        $region24: #{tpu_custom_call.1} parent=19 // pred_fallthru
          _
        // Predicated region
        $region25: #{tpu_custom_call.1} parent=19 // pred_check
          %p239 = pneg %p109
        $region26: #{tpu_custom_call.1} parent=19 // pred_check_branch
          %241 = sbr.rel (%p239) target = $region28
        $region27: #{tpu_custom_call.1} parent=19 // pred_region
          %p242 = scmp.lt.s32.totalorder %s25, 1
          %s243 = scalar_select %p242, %s25, 1
          %s244 = smul.addr %s243, 9
          %s245 = smul.addr %s244, 4
          %s246 = scalar_lea.vmem %s2, %s245
        $region28: #{tpu_custom_call.1} parent=19 // pred_fallthru
          _
      $region20: #{tpu_custom_call.1} parent=5 // pred_fallthru
        _
      %p247 = scmp.le.s32.totalorder 1, %s18
      %p248 = scmp.lt.s32.totalorder %s18, 3
      %p249 = pnand %p247, %p248
      %p250 = pneg %p249
      // Predicated region
      $region29: #{tpu_custom_call.1} parent=5 // pred_check
        _
      $region30: #{tpu_custom_call.1} parent=5 // pred_check_branch
        %252 = sbr.rel (%p249) target = $region32
      $region31: #{tpu_custom_call.1} parent=5 // pred_region
        %s253 = ssub.s32 %s18, 1
        %p254 = scmp.lt.s32.totalorder %s30, 0
        %s255 = scalar_select %p254, %s30, 0
        %s256 = smul.addr %s255, 4
        %s257 = scalar_lea.vmem %s0, %s256
        %p258 = pneg %p63
        %p259 = pneg %p60
        %p260 = scmp.lt.s32.totalorder %s28, 1
        %s261 = scalar_select %p260, %s28, 1
        %s262 = smul.addr %s261, 9
        %s263 = smul.addr %s262, 4
        %s264 = scalar_lea.vmem %s1, %s263
        %p265 = pneg %p89
        %p266 = pneg %p86
        %p267 = scmp.lt.s32.totalorder %s28, 1
        %s268 = scalar_select %p267, %s28, 1
        %s269 = smul.addr %s268, 9
        %s270 = smul.addr %s269, 4
        %s271 = scalar_lea.vmem %s2, %s270
        %p272 = pneg %p115
        %p273 = pneg %p112
        %p274 = pneg %p145
        %p275 = pneg %p142
        %s276 = sand.u32 %s132, 1
        %s277 = scalar_lea.sflag [#allocation3], %s276
        %s278 = sand.u32 %s132, 1
        %s279 = smul.addr %s278, 32
        %s280 = scalar_lea.vmem [#allocation2], %s279
        %p281 = pneg %p175
        %p282 = pneg %p172
        %s283 = sand.u32 %s23, 1
        %s284 = scalar_lea.sflag [#allocation5], %s283
        %s285 = sand.u32 %s162, 1
        %s286 = scalar_lea.vmem [#allocation4], %s285
        %p287 = pneg %p205
        %p288 = pneg %p202
        %s289 = sand.u32 %s23, 1
        %s290 = scalar_lea.sflag [#allocation5], %s289
        %s291 = sand.u32 %s192, 1
        %s292 = scalar_lea.vmem [#allocation6], %s291
        %p293 = scmp.lt.s32.totalorder %s30, 0
        %s294 = scalar_select %p293, %s30, 0
        %s295 = smul.addr %s294, 4
        %s296 = scalar_lea.vmem %s0, %s295
        %p297 = scmp.lt.s32.totalorder %s28, 1
        %s298 = scalar_select %p297, %s28, 1
        %s299 = smul.addr %s298, 9
        %s300 = smul.addr %s299, 4
        %s301 = scalar_lea.vmem %s1, %s300
        %p302 = scmp.lt.s32.totalorder %s28, 1
        %s303 = scalar_select %p302, %s28, 1
        %s304 = smul.addr %s303, 9
        %s305 = smul.addr %s304, 4
        %s306 = scalar_lea.vmem %s2, %s305
        %s307 = smul.u32 8, %s29
        %s309 = smul.u32 %s29, 64
        %s310 = sshra.s32 %s309, 3
        %s311 = sand.u32 %s309, 7
        %s312 = smul.addr %s310, 4
        %s313 = scalar_lea.vmem %s301, %s312
        %v314 = vld [vmem:[%s313] sm:$0xf]
        %v315 = vld [vmem:[%s313 + $0x4] sm:$0xf]
        %v316 = vld [vmem:[%s313 + $0x8] sm:$0xf]
        %v317 = vld [vmem:[%s313 + $0xc] sm:$0xf]
        %v318 = vld [vmem:[%s313 + $0x10] sm:$0xf]
        %v319 = vld [vmem:[%s313 + $0x14] sm:$0xf]
        %v320 = vld [vmem:[%s313 + $0x18] sm:$0xf]
        %v321 = vld [vmem:[%s313 + $0x1c] sm:$0xf]
        %v322 = vld [vmem:[%s296] sm:$0xf]
        %v323 = vld [vmem:[%s296 + $0x4] sm:$0x3]
        %s324 = smul.addr %s310, 4
        %s325 = scalar_lea.vmem %s306, %s324
        %v326 = vld [vmem:[%s325] sm:$0xf]
        %v327 = vld [vmem:[%s325 + $0x4] sm:$0xf]
        %v328 = vld [vmem:[%s325 + $0x8] sm:$0xf]
        %v329 = vld [vmem:[%s325 + $0xc] sm:$0xf]
        %v330 = vld [vmem:[%s325 + $0x10] sm:$0xf]
        %v331 = vld [vmem:[%s325 + $0x14] sm:$0xf]
        %v332 = vld [vmem:[%s325 + $0x18] sm:$0xf]
        %v333 = vld [vmem:[%s325 + $0x1c] sm:$0xf]
        %s334 = scalar_lea.vmem %s296, 8
        %v335 = vld [vmem:[%s334] sm:$0xf]
        %v336 = vld [vmem:[%s334 + $0x4] sm:$0x3]
        %v345 = vunpack.c.l.b16 %v326
        %v346 = vunpack.c.l.b16 %v327
        %v347 = vunpack.c.l.b16 %v328
        %v348 = vunpack.c.l.b16 %v329
        %v349 = vunpack.c.l.b16 %v330
        %v350 = vunpack.c.l.b16 %v331
        %v351 = vunpack.c.l.b16 %v332
        %v352 = vunpack.c.l.b16 %v333
        %v353 = vpack.c.b16 %v346, %v345
        %v354 = vpack.c.b16 %v348, %v347
        %v355 = vpack.c.b16 %v350, %v349
        %v356 = vpack.c.b16 %v352, %v351
        %v359 = vunpack.c.l.b16 %v335
        %v360 = vunpack.c.l.b16 %v336
        %v361 = vpack.c.b16 %v360, %v359
        %vm362 = vcmask 97280
        %v364 = vsel %vm362, %v353, 0
        %v367 = vsel %vm362, %v354, 0
        %v370 = vsel %vm362, %v355, 0
        %v373 = vsel %vm362, %v356, 0
        %vm375 = vcmask 1045504
        %v377 = vsel %vm375, %v361, 0
        %379 = vmatprep.subr.bf16.mxu0 0
        %380 = vmatpush1.bf16.msra.mxu0 %v377
        %381 = vmatprep.subr.bf16.mxu0 0
        %382 = vmatpush1.bf16.msra.mxu0 0
        %383 = vmatprep.subr.bf16.mxu0 0
        %384 = vmatpush1.bf16.msra.mxu0 0
        %385 = vmatprep.subr.bf16.mxu0 0
        %386 = vmatpush1.bf16.msra.mxu0 0
        %387 = vmatprep.subr.bf16.mxu0 0
        %388 = vmatpush1.bf16.msra.mxu0 0
        %389 = vmatprep.subr.bf16.mxu0 0
        %390 = vmatpush1.bf16.msra.mxu0 0
        %391 = vmatprep.subr.bf16.mxu0 0
        %392 = vmatpush1.bf16.msra.mxu0 0
        %393 = vmatprep.subr.bf16.mxu0 0
        %394 = vmatpush1.bf16.msra.mxu0 0
        %395 = vmatprep.subr.bf16.mxu0 0
        %396 = vmatpush1.bf16.msra.mxu0 0
        %397 = vmatprep.subr.bf16.mxu0 0
        %398 = vmatpush1.bf16.msra.mxu0 0
        %399 = vmatprep.subr.bf16.mxu0 0
        %400 = vmatpush1.bf16.msra.mxu0 0
        %401 = vmatprep.subr.bf16.mxu0 0
        %402 = vmatpush1.bf16.msra.mxu0 0
        %403 = vmatprep.subr.bf16.mxu0 0
        %404 = vmatpush1.bf16.msra.mxu0 0
        %405 = vmatprep.subr.bf16.mxu0 0
        %406 = vmatpush1.bf16.msra.mxu0 0
        %407 = vmatprep.subr.bf16.mxu0 0
        %408 = vmatpush1.bf16.msra.mxu0 0
        %409 = vmatprep.subr.bf16.mxu0 0
        %410 = vmatpush1.bf16.msra.mxu0 0
        %411 = vmatprep.mubr.bf16.mxu0 0
        %412 = vmatmul.mubr.bf16.gmra.mrb[0].mxu0 %v364
        %v413 = vpop.f32.mrb[0].mxu0
        %v414 = vadd.f32 0.0, %v413
        %v415 = vpop.f32.mrb[0].mxu0
        %v416 = vpop.f32.mrb[0].mxu0
        %v417 = vadd.f32 0.0, %v416
        %v418 = vpop.f32.mrb[0].mxu0
        %419 = vmatprep.mubr.bf16.mxu0 0
        %420 = vmatmul.mubr.bf16.gmra.mrb[0].mxu0 %v367
        %v421 = vpop.f32.mrb[0].mxu0
        %v422 = vadd.f32 0.0, %v421
        %v423 = vpop.f32.mrb[0].mxu0
        %v424 = vpop.f32.mrb[0].mxu0
        %v425 = vadd.f32 0.0, %v424
        %v426 = vpop.f32.mrb[0].mxu0
        %427 = vmatprep.mubr.bf16.mxu0 0
        %428 = vmatmul.mubr.bf16.gmra.mrb[0].mxu0 %v370
        %v429 = vpop.f32.mrb[0].mxu0
        %v430 = vadd.f32 0.0, %v429
        %v431 = vpop.f32.mrb[0].mxu0
        %v432 = vpop.f32.mrb[0].mxu0
        %v433 = vadd.f32 0.0, %v432
        %v434 = vpop.f32.mrb[0].mxu0
        %435 = vmatprep.mubr.bf16.mxu0 0
        %436 = vmatmul.mubr.bf16.gmra.mrb[0].mxu0 %v373
        %v437 = vpop.f32.mrb[0].mxu0
        %v438 = vadd.f32 0.0, %v437
        %v439 = vpop.f32.mrb[0].mxu0
        %v440 = vpop.f32.mrb[0].mxu0
        %v441 = vadd.f32 0.0, %v440
        %v442 = vpop.f32.mrb[0].mxu0
        %443 = vdwg.mxu0
        %v452 = vunpack.c.l.b16 %v314
        %v453 = vunpack.c.l.b16 %v315
        %v454 = vunpack.c.l.b16 %v316
        %v455 = vunpack.c.l.b16 %v317
        %v456 = vunpack.c.l.b16 %v318
        %v457 = vunpack.c.l.b16 %v319
        %v458 = vunpack.c.l.b16 %v320
        %v459 = vunpack.c.l.b16 %v321
        %v460 = vpack.c.b16 %v453, %v452
        %v461 = vpack.c.b16 %v455, %v454
        %v462 = vpack.c.b16 %v457, %v456
        %v463 = vpack.c.b16 %v459, %v458
        %v466 = vunpack.c.l.b16 %v322
        %v467 = vunpack.c.l.b16 %v323
        %v468 = vpack.c.b16 %v467, %v466
        %v470 = vsel %vm362, %v460, 0
        %v473 = vsel %vm362, %v461, 0
        %v476 = vsel %vm362, %v462, 0
        %v479 = vsel %vm362, %v463, 0
        %v482 = vsel %vm375, %v468, 0
        %484 = vmatprep.subr.bf16.mxu0 0
        %485 = vmatpush1.bf16.msra.mxu0 %v482
        %486 = vmatprep.subr.bf16.mxu0 0
        %487 = vmatpush1.bf16.msra.mxu0 0
        %488 = vmatprep.subr.bf16.mxu0 0
        %489 = vmatpush1.bf16.msra.mxu0 0
        %490 = vmatprep.subr.bf16.mxu0 0
        %491 = vmatpush1.bf16.msra.mxu0 0
        %492 = vmatprep.subr.bf16.mxu0 0
        %493 = vmatpush1.bf16.msra.mxu0 0
        %494 = vmatprep.subr.bf16.mxu0 0
        %495 = vmatpush1.bf16.msra.mxu0 0
        %496 = vmatprep.subr.bf16.mxu0 0
        %497 = vmatpush1.bf16.msra.mxu0 0
        %498 = vmatprep.subr.bf16.mxu0 0
        %499 = vmatpush1.bf16.msra.mxu0 0
        %500 = vmatprep.subr.bf16.mxu0 0
        %501 = vmatpush1.bf16.msra.mxu0 0
        %502 = vmatprep.subr.bf16.mxu0 0
        %503 = vmatpush1.bf16.msra.mxu0 0
        %504 = vmatprep.subr.bf16.mxu0 0
        %505 = vmatpush1.bf16.msra.mxu0 0
        %506 = vmatprep.subr.bf16.mxu0 0
        %507 = vmatpush1.bf16.msra.mxu0 0
        %508 = vmatprep.subr.bf16.mxu0 0
        %509 = vmatpush1.bf16.msra.mxu0 0
        %510 = vmatprep.subr.bf16.mxu0 0
        %511 = vmatpush1.bf16.msra.mxu0 0
        %512 = vmatprep.subr.bf16.mxu0 0
        %513 = vmatpush1.bf16.msra.mxu0 0
        %514 = vmatprep.subr.bf16.mxu0 0
        %515 = vmatpush1.bf16.msra.mxu0 0
        %516 = vmatprep.mubr.bf16.mxu0 0
        %517 = vmatmul.mubr.bf16.gmra.mrb[0].mxu0 %v470
        %v518 = vpop.f32.mrb[0].mxu0
        %v519 = vadd.f32 %v414, %v518
        %v520 = vpop.f32.mrb[0].mxu0
        %v521 = vpop.f32.mrb[0].mxu0
        %v522 = vadd.f32 %v417, %v521
        %v523 = vpop.f32.mrb[0].mxu0
        %524 = vmatprep.mubr.bf16.mxu0 0
        %525 = vmatmul.mubr.bf16.gmra.mrb[0].mxu0 %v473
        %v526 = vpop.f32.mrb[0].mxu0
        %v527 = vadd.f32 %v422, %v526
        %v528 = vpop.f32.mrb[0].mxu0
        %v529 = vpop.f32.mrb[0].mxu0
        %v530 = vadd.f32 %v425, %v529
        %v531 = vpop.f32.mrb[0].mxu0
        %532 = vmatprep.mubr.bf16.mxu0 0
        %533 = vmatmul.mubr.bf16.gmra.mrb[0].mxu0 %v476
        %v534 = vpop.f32.mrb[0].mxu0
        %v535 = vadd.f32 %v430, %v534
        %v536 = vpop.f32.mrb[0].mxu0
        %v537 = vpop.f32.mrb[0].mxu0
        %v538 = vadd.f32 %v433, %v537
        %v539 = vpop.f32.mrb[0].mxu0
        %540 = vmatprep.mubr.bf16.mxu0 0
        %541 = vmatmul.mubr.bf16.gmra.mrb[0].mxu0 %v479
        %v542 = vpop.f32.mrb[0].mxu0
        %v543 = vadd.f32 %v438, %v542
        %v544 = vpop.f32.mrb[0].mxu0
        %v545 = vpop.f32.mrb[0].mxu0
        %v546 = vadd.f32 %v441, %v545
        %v547 = vpop.f32.mrb[0].mxu0
        %548 = vdwg.mxu0
        %s549 = smul.u32 %s29, 8
        %s550 = sadd.s32 %s549, 1
        %s551 = smul.u32 %s550, 8
        %s552 = sshra.s32 %s551, 3
        %s553 = sand.u32 %s551, 7
        %s554 = smul.addr %s552, 4
        %s555 = scalar_lea.vmem %s301, %s554
        %v556 = vld [vmem:[%s555] sm:$0xf]
        %v557 = vld [vmem:[%s555 + $0x4] sm:$0xf]
        %v558 = vld [vmem:[%s555 + $0x8] sm:$0xf]
        %v559 = vld [vmem:[%s555 + $0xc] sm:$0xf]
        %v560 = vld [vmem:[%s555 + $0x10] sm:$0xf]
        %v561 = vld [vmem:[%s555 + $0x14] sm:$0xf]
        %v562 = vld [vmem:[%s555 + $0x18] sm:$0xf]
        %v563 = vld [vmem:[%s555 + $0x1c] sm:$0xf]
        %s564 = scalar_lea.vmem %s296, 16
        %v565 = vld [vmem:[%s564] sm:$0xf]
        %v566 = vld [vmem:[%s564 + $0x4] sm:$0x3]
        %v575 = vunpack.c.l.b16 %v556
        %v576 = vunpack.c.l.b16 %v557
        %v577 = vunpack.c.l.b16 %v558
        %v578 = vunpack.c.l.b16 %v559
        %v579 = vunpack.c.l.b16 %v560
        %v580 = vunpack.c.l.b16 %v561
        %v581 = vunpack.c.l.b16 %v562
        %v582 = vunpack.c.l.b16 %v563
        %v583 = vpack.c.b16 %v576, %v575
        %v584 = vpack.c.b16 %v578, %v577
        %v585 = vpack.c.b16 %v580, %v579
        %v586 = vpack.c.b16 %v582, %v581
        %v589 = vunpack.c.l.b16 %v565
        %v590 = vunpack.c.l.b16 %v566
        %v591 = vpack.c.b16 %v590, %v589
        %v593 = vsel %vm362, %v583, 0
        %v596 = vsel %vm362, %v584, 0
        %v599 = vsel %vm362, %v585, 0
        %v602 = vsel %vm362, %v586, 0
        %v605 = vsel %vm375, %v591, 0
        %607 = vmatprep.subr.bf16.mxu0 0
        %608 = vmatpush1.bf16.msra.mxu0 %v605
        %609 = vmatprep.subr.bf16.mxu0 0
        %610 = vmatpush1.bf16.msra.mxu0 0
        %611 = vmatprep.subr.bf16.mxu0 0
        %612 = vmatpush1.bf16.msra.mxu0 0
        %613 = vmatprep.subr.bf16.mxu0 0
        %614 = vmatpush1.bf16.msra.mxu0 0
        %615 = vmatprep.subr.bf16.mxu0 0
        %616 = vmatpush1.bf16.msra.mxu0 0
        %617 = vmatprep.subr.bf16.mxu0 0
        %618 = vmatpush1.bf16.msra.mxu0 0
        %619 = vmatprep.subr.bf16.mxu0 0
        %620 = vmatpush1.bf16.msra.mxu0 0
        %621 = vmatprep.subr.bf16.mxu0 0
        %622 = vmatpush1.bf16.msra.mxu0 0
        %623 = vmatprep.subr.bf16.mxu0 0
        %624 = vmatpush1.bf16.msra.mxu0 0
        %625 = vmatprep.subr.bf16.mxu0 0
        %626 = vmatpush1.bf16.msra.mxu0 0
        %627 = vmatprep.subr.bf16.mxu0 0
        %628 = vmatpush1.bf16.msra.mxu0 0
        %629 = vmatprep.subr.bf16.mxu0 0
        %630 = vmatpush1.bf16.msra.mxu0 0
        %631 = vmatprep.subr.bf16.mxu0 0
        %632 = vmatpush1.bf16.msra.mxu0 0
        %633 = vmatprep.subr.bf16.mxu0 0
        %634 = vmatpush1.bf16.msra.mxu0 0
        %635 = vmatprep.subr.bf16.mxu0 0
        %636 = vmatpush1.bf16.msra.mxu0 0
        %637 = vmatprep.subr.bf16.mxu0 0
        %638 = vmatpush1.bf16.msra.mxu0 0
        %639 = vmatprep.mubr.bf16.mxu0 0
        %640 = vmatmul.mubr.bf16.gmra.mrb[0].mxu0 %v593
        %v641 = vpop.f32.mrb[0].mxu0
        %v642 = vadd.f32 0.0, %v641
        %v643 = vpop.f32.mrb[0].mxu0
        %v644 = vpop.f32.mrb[0].mxu0
        %v645 = vadd.f32 0.0, %v644
        %v646 = vpop.f32.mrb[0].mxu0
        %647 = vmatprep.mubr.bf16.mxu0 0
        %648 = vmatmul.mubr.bf16.gmra.mrb[0].mxu0 %v596
        %v649 = vpop.f32.mrb[0].mxu0
        %v650 = vadd.f32 0.0, %v649
        %v651 = vpop.f32.mrb[0].mxu0
        %v652 = vpop.f32.mrb[0].mxu0
        %v653 = vadd.f32 0.0, %v652
        %v654 = vpop.f32.mrb[0].mxu0
        %655 = vmatprep.mubr.bf16.mxu0 0
        %656 = vmatmul.mubr.bf16.gmra.mrb[0].mxu0 %v599
        %v657 = vpop.f32.mrb[0].mxu0
        %v658 = vadd.f32 0.0, %v657
        %v659 = vpop.f32.mrb[0].mxu0
        %v660 = vpop.f32.mrb[0].mxu0
        %v661 = vadd.f32 0.0, %v660
        %v662 = vpop.f32.mrb[0].mxu0
        %663 = vmatprep.mubr.bf16.mxu0 0
        %664 = vmatmul.mubr.bf16.gmra.mrb[0].mxu0 %v602
        %v665 = vpop.f32.mrb[0].mxu0
        %v666 = vadd.f32 0.0, %v665
        %v667 = vpop.f32.mrb[0].mxu0
        %v668 = vpop.f32.mrb[0].mxu0
        %v669 = vadd.f32 0.0, %v668
        %v670 = vpop.f32.mrb[0].mxu0
        %671 = vdwg.mxu0
        %v672 = vadd.f32 %v519, %v642
        %v673 = vadd.f32 %v522, %v645
        %v674 = vadd.f32 %v527, %v650
        %v675 = vadd.f32 %v530, %v653
        %v676 = vadd.f32 %v535, %v658
        %v677 = vadd.f32 %v538, %v661
        %v678 = vadd.f32 %v543, %v666
        %v679 = vadd.f32 %v546, %v669
        %v680 = vpack.c.bf16 %v673, %v672
        %v681 = vpack.c.bf16 %v675, %v674
        %v682 = vpack.c.bf16 %v677, %v676
        %v683 = vpack.c.bf16 %v679, %v678
        %v688 = vunpack.c.l.b16 %v680
        %v689 = vunpack.c.h.b16 %v680
        %v690 = vunpack.c.l.b16 %v681
        %v691 = vunpack.c.h.b16 %v681
        %v692 = vunpack.c.l.b16 %v682
        %v693 = vunpack.c.h.b16 %v682
        %v694 = vunpack.c.l.b16 %v683
        %v695 = vunpack.c.h.b16 %v683
        %v696 = vpack.c.b16 %v688, %v688
        %v697 = vpack.c.b16 %v689, %v689
        %v698 = vpack.c.b16 %v690, %v690
        %v699 = vpack.c.b16 %v691, %v691
        %v700 = vpack.c.b16 %v692, %v692
        %v701 = vpack.c.b16 %v693, %v693
        %v702 = vpack.c.b16 %v694, %v694
        %v703 = vpack.c.b16 %v695, %v695
        %712 = vst [vmem:[%s280] sm:$0xf] %v696
        %713 = vst [vmem:[%s280 + $0x4] sm:$0xf] %v697
        %714 = vst [vmem:[%s280 + $0x8] sm:$0xf] %v698
        %715 = vst [vmem:[%s280 + $0xc] sm:$0xf] %v699
        %716 = vst [vmem:[%s280 + $0x10] sm:$0xf] %v700
        %717 = vst [vmem:[%s280 + $0x14] sm:$0xf] %v701
        %718 = vst [vmem:[%s280 + $0x18] sm:$0xf] %v702
        %719 = vst [vmem:[%s280 + $0x1c] sm:$0xf] %v703
        %v720 = vadd.f32 %v672, %v673
        %v721 = vadd.f32 %v720, %v674
        %v722 = vadd.f32 %v721, %v675
        %v723 = vadd.f32 %v722, %v676
        %v724 = vadd.f32 %v723, %v677
        %v725 = vadd.f32 %v724, %v678
        %v726 = vadd.f32 %v725, %v679
        %v727 = vrot.slane %v726, 4
        %v728 = vadd.f32 %v726, %v727
        %v729 = vrot.slane %v728, 2
        %v730 = vadd.f32 %v728, %v729
        %v731 = vrot.slane %v730, 1
        %v732 = vadd.f32 %v730, %v731
        %v733 = vrcp.pop 64.0
        %v734 = vmul.f32 %v732, %v733
        %735 = vst [vmem:[%s286] sm:$0x1] %v734
        %v736 = vsub.f32 %v672, %v734
        %v737 = vsub.f32 %v673, %v734
        %v738 = vsub.f32 %v674, %v734
        %v739 = vsub.f32 %v675, %v734
        %v740 = vsub.f32 %v676, %v734
        %v741 = vsub.f32 %v677, %v734
        %v742 = vsub.f32 %v678, %v734
        %v743 = vsub.f32 %v679, %v734
        %v744 = vmul.f32 %v736, %v736
        %v745 = vmul.f32 %v737, %v737
        %v746 = vmul.f32 %v738, %v738
        %v747 = vmul.f32 %v739, %v739
        %v748 = vmul.f32 %v740, %v740
        %v749 = vmul.f32 %v741, %v741
        %v750 = vmul.f32 %v742, %v742
        %v751 = vmul.f32 %v743, %v743
        %v752 = vadd.f32 %v744, %v745
        %v753 = vadd.f32 %v752, %v746
        %v754 = vadd.f32 %v753, %v747
        %v755 = vadd.f32 %v754, %v748
        %v756 = vadd.f32 %v755, %v749
        %v757 = vadd.f32 %v756, %v750
        %v758 = vadd.f32 %v757, %v751
        %v759 = vrot.slane %v758, 4
        %v760 = vadd.f32 %v758, %v759
        %v761 = vrot.slane %v760, 2
        %v762 = vadd.f32 %v760, %v761
        %v763 = vrot.slane %v762, 1
        %v764 = vadd.f32 %v762, %v763
        %765 = vst [vmem:[%s292] sm:$0x1] %v764
        %s766 = sand.u32 %s132, 1
        %s767 = scalar_lea.sflag [#allocation3], %s766
        %s768 = sand.u32 %s132, 1
        %s769 = smul.addr %s768, 32
        %s770 = scalar_lea.vmem [#allocation2], %s769
        %s771 = sand.u32 %s23, 1
        %s772 = scalar_lea.sflag [#allocation5], %s771
        %s773 = sand.u32 %s162, 1
        %s774 = scalar_lea.vmem [#allocation4], %s773
        %s775 = sand.u32 %s23, 1
        %s776 = scalar_lea.sflag [#allocation5], %s775
        %s777 = sand.u32 %s192, 1
        %s778 = scalar_lea.vmem [#allocation6], %s777
        // Predicated region
        $region33: #{tpu_custom_call.1} parent=31 // pred_check
          %p779 = pneg %p142
        $region34: #{tpu_custom_call.1} parent=31 // pred_check_branch
          %781 = sbr.rel (%p779) target = $region36
        $region35: #{tpu_custom_call.1} parent=31 // pred_region
          %s782 = smul.u32 8, %s29
          %s784 = ssub.s32 512, 512
          %785 = vsyncadd %s767, %s784
          %s786 = sadd.s32 %s30, %s782
          %s787 = smul.addr %s28, 8
          %s788 = sadd.s32 %s786, %s787
          %s789 = smul.addr %s788, 64
          %s790 = scalar_lea.hbm %s3, %s789
          %s791 = sshll.u32 %s770, 4
          %s792 = int_to_ptr.vmem [resolvable:$true] %s791
          %797 = dma.vmem_to_hbm [thread:$0]  %s792, 512, %s790, %s767, 64, 64, 4
        $region36: #{tpu_custom_call.1} parent=31 // pred_fallthru
          _
        // Predicated region
        $region37: #{tpu_custom_call.1} parent=31 // pred_check
          %p798 = pneg %p172
        $region38: #{tpu_custom_call.1} parent=31 // pred_check_branch
          %800 = sbr.rel (%p798) target = $region40
        $region39: #{tpu_custom_call.1} parent=31 // pred_region
          %s802 = ssub.s32 16, 16
          %803 = vsyncadd %s772, %s802
          %s804 = sadd.s32 %s30, %s29
          %s805 = sadd.s32 %s804, %s28
          %s806 = smul.addr %s805, 16
          %s807 = scalar_lea.hbm %s4, %s806
          %s809 = sshll.u32 %s774, 4
          %s810 = int_to_ptr.vmem [resolvable:$true] %s809
          %812 = dma.vmem_to_hbm [thread:$0]  %s810, 16, %s807, %s772
        $region40: #{tpu_custom_call.1} parent=31 // pred_fallthru
          _
        // Predicated region
        $region41: #{tpu_custom_call.1} parent=31 // pred_check
          %p813 = pneg %p202
        $region42: #{tpu_custom_call.1} parent=31 // pred_check_branch
          %815 = sbr.rel (%p813) target = $region44
        $region43: #{tpu_custom_call.1} parent=31 // pred_region
          %s817 = ssub.s32 16, 16
          %818 = vsyncadd %s776, %s817
          %s819 = sadd.s32 %s30, %s29
          %s820 = sadd.s32 %s819, %s28
          %s821 = smul.addr %s820, 16
          %s822 = scalar_lea.hbm %s5, %s821
          %s824 = sshll.u32 %s778, 4
          %s825 = int_to_ptr.vmem [resolvable:$true] %s824
          %827 = dma.vmem_to_hbm [thread:$0]  %s825, 16, %s822, %s776
        $region44: #{tpu_custom_call.1} parent=31 // pred_fallthru
          _
      $region32: #{tpu_custom_call.1} parent=5 // pred_fallthru
        _
      %p828 = scmp.le.s32.totalorder 2, %s18
      // Predicated region
      $region45: #{tpu_custom_call.1} parent=5 // pred_check
        %p829 = pneg %p828
      $region46: #{tpu_custom_call.1} parent=5 // pred_check_branch
        %831 = sbr.rel (%p829) target = $region48
      $region47: #{tpu_custom_call.1} parent=5 // pred_region
        %s832 = ssub.s32 %s18, 2
        // Predicated region
        $region49: #{tpu_custom_call.1} parent=47 // pred_check
          %p833 = pneg %p148
        $region50: #{tpu_custom_call.1} parent=47 // pred_check_branch
          %835 = sbr.rel (%p833) target = $region52
        $region51: #{tpu_custom_call.1} parent=47 // pred_region
          %s836 = sand.u32 %s133, 1
          %s837 = scalar_lea.sflag [#allocation3], %s836
          %s838 = sand.u32 %s133, 1
          %s839 = smul.addr %s838, 32
          %s840 = scalar_lea.vmem [#allocation2], %s839
          %841 = dma.done %s837, 512
        $region52: #{tpu_custom_call.1} parent=47 // pred_fallthru
          _
        // Predicated region
        $region53: #{tpu_custom_call.1} parent=47 // pred_check
          %p842 = pneg %p178
        $region54: #{tpu_custom_call.1} parent=47 // pred_check_branch
          %844 = sbr.rel (%p842) target = $region56
        $region55: #{tpu_custom_call.1} parent=47 // pred_region
          %s845 = sand.u32 %s24, 1
          %s846 = scalar_lea.sflag [#allocation5], %s845
          %s847 = sand.u32 %s163, 1
          %s848 = scalar_lea.vmem [#allocation4], %s847
          %849 = dma.done %s846, 16
        $region56: #{tpu_custom_call.1} parent=47 // pred_fallthru
          _
        // Predicated region
        $region57: #{tpu_custom_call.1} parent=47 // pred_check
          %p850 = pneg %p208
        $region58: #{tpu_custom_call.1} parent=47 // pred_check_branch
          %852 = sbr.rel (%p850) target = $region60
        $region59: #{tpu_custom_call.1} parent=47 // pred_region
          %s853 = sand.u32 %s24, 1
          %s854 = scalar_lea.sflag [#allocation5], %s853
          %s855 = sand.u32 %s193, 1
          %s856 = scalar_lea.vmem [#allocation6], %s855
          %857 = dma.done %s854, 16
        $region60: #{tpu_custom_call.1} parent=47 // pred_fallthru
          _
      $region48: #{tpu_custom_call.1} parent=5 // pred_fallthru
        _
    $region6: #{tpu_custom_call.1} parent=1 // loop_footer
      %s22 = sadd.s32 1, %s18
    $region7: #{tpu_custom_call.1} parent=1 // loop_footer_branch
      %17 = sbr.rel target = $region3
    $region8: #{tpu_custom_call.1} parent=1 // loop_exit
      _
    %858 = vsyncpa [#allocation3], 1
    %s859 = scalar_lea.sflag [#allocation3], 1
    %860 = vsyncpa %s859, 1
    %861 = vsyncpa [#allocation5], 1
    %s862 = scalar_lea.sflag [#allocation5], 1
    %863 = vsyncpa %s862, 1

</llo_original>
